<compile_context>
chip_gen: v6e
topology: v6e:2x2x1
jax: 0.10.0
libtpu: 0.0.40
codegen_flags: <defaults>
</compile_context>

<pallas_src>
import functools

import jax
import jax.numpy as jnp
from jax.experimental import pallas as pl
from jax.experimental.pallas import tpu as pltpu

# Loss weights from CustomLoss.__init__ defaults.
LAMBDA_DENOISE = 0.5
LAMBDA_SUM = 1.0
LAMBDA_RECON = 1.0

_MiB = 1024 * 1024


def _custom_loss_kernel(x_ref, y_ref, d_ref, loss_ref, *,
                        w_recon, w_denoise, w_sum, total_rows, mask_rows):
    """One batch tile -> one weighted partial scalar written to its own block."""
    x = x_ref[...].astype(jnp.float32)   # (TB, F)
    y = y_ref[...].astype(jnp.float32)   # (TB, F)
    d = d_ref[...].astype(jnp.float32)   # (TB, F-1)
    tb = x.shape[0]

    # reconstruction residual (VPU)
    diff = y - x                                              # (TB, F)
    # denoising residual: den - input[:, 1:]  (static lane shift -> XLU, idle here)
    dd = d - x[:, 1:]                                         # (TB, F-1)
    # sum-constraint per row: rowsum(den) - input[:, 0]
    srow = jnp.sum(d, axis=1, keepdims=True) - x[:, 0:1]      # (TB, 1)

    if mask_rows:  # only traced when B % batch_tile != 0 (ragged last tile)
        row = (jax.lax.broadcasted_iota(jnp.int32, (tb, 1), 0)
               + pl.program_id(0) * tb)
        valid = row < total_rows
        diff = jnp.where(valid, diff, 0.0)
        dd = jnp.where(valid, dd, 0.0)
        srow = jnp.where(valid, srow, 0.0)

    # Global (compile-time) scales -> per-tile partials sum exactly to the loss.
    tile_loss = (w_recon * jnp.sum(diff * diff)
                 + w_denoise * jnp.sum(dd * dd)
                 + w_sum * jnp.sum(jnp.abs(srow)))

    loss_ref[...] = jnp.full((1, 1, 1), tile_loss, dtype=jnp.float32)


def _vmem_budget_bytes():
    """Per-generation VMEM budget for this kernel (leave half of physical free)."""
    try:
        phys = int(pltpu.get_tpu_info().vmem_capacity_bytes)
    except Exception:
        phys = 64 * _MiB  # conservative: v7x per-TensorCore capacity
    return min(phys // 2, 64 * _MiB)


def _pick_batch_tile(B, F, itemsize, buf_budget_bytes):
    """Largest sublane-aligned row tile that fits the streamed-input budget."""
    # 3 double-buffered streamed inputs (x, y, den) + ~4 f32 temporaries per row.
    bytes_per_row = 2 * (3 * F - 1) * itemsize + 4 * F * 4
    tile = max(8, buf_budget_bytes // bytes_per_row)
    if tile >= B:
        return B                       # single block: any B is a legal block dim
    return max(8, (tile // 8) * 8)     # sublane multiple when tiling


def custom_loss(inp, out, den, *, batch_tile=None):
    """Pallas wrapper: per-tile weighted partials, summed in the wrapper."""
    B, F = inp.shape
    assert out.shape == (B, F)
    assert den.shape == (B, F - 1)

    itemsize = jnp.dtype(inp.dtype).itemsize
    vmem_limit = _vmem_budget_bytes()
    if batch_tile is None:
        batch_tile = _pick_batch_tile(B, F, itemsize, int(vmem_limit * 0.75))

    nb = pl.cdiv(B, batch_tile)
    mask_rows = (B % batch_tile) != 0

    kernel = functools.partial(
        _custom_loss_kernel,
        # Scales folded at trace time; global B/F so per-tile partials add up
        # to the exact means regardless of tiling / ragged last tile.
        w_recon=LAMBDA_RECON / (B * F),
        w_denoise=LAMBDA_DENOISE / (B * (F - 1)),
        w_sum=LAMBDA_SUM / B,
        total_rows=B,
        mask_rows=mask_rows,
    )

    cost = pl.CostEstimate(
        flops=int(8 * B * F),
        transcendentals=0,
        bytes_accessed=int((2 * B * F + B * (F - 1)) * itemsize + nb * 4),
    )

    partials = pl.pallas_call(
        kernel,
        out_shape=jax.ShapeDtypeStruct((nb, 1, 1), jnp.float32),
        grid=(nb,),
        in_specs=[
            pl.BlockSpec((batch_tile, F), lambda i: (i, 0)),       # input
            pl.BlockSpec((batch_tile, F), lambda i: (i, 0)),       # output
            pl.BlockSpec((batch_tile, F - 1), lambda i: (i, 0)),   # denoised
        ],
        out_specs=pl.BlockSpec((1, 1, 1), lambda i: (i, 0, 0)),
        compiler_params=pltpu.CompilerParams(
            dimension_semantics=("parallel",),   # independent tiles -> megacore OK
            vmem_limit_bytes=int(vmem_limit),
        ),
        cost_estimate=cost,
    )(inp, out, den)

    return jnp.sum(partials)


def custom_loss_ref(inp, out, den):
    """Pure-JAX reference mirroring the PyTorch forward."""
    recon = jnp.mean((out - inp) ** 2)
    denoise = jnp.mean((den - inp[:, 1:]) ** 2)
    sum_constraint = jnp.mean(jnp.abs(jnp.sum(den, axis=1) - inp[:, 0]))
    return (LAMBDA_RECON * recon
            + LAMBDA_DENOISE * denoise
            + LAMBDA_SUM * sum_constraint)


if __name__ == "__main__":
    B, F = 8, 32  # batch_size, num_features

    key = jax.random.PRNGKey(0)
    k_in, k_out, k_den = jax.random.split(key, 3)
    inp = jax.random.normal(k_in, (B, F), dtype=jnp.float32)
    out = jax.random.normal(k_out, (B, F), dtype=jnp.float32)
    den = jax.random.normal(k_den, (B, F - 1), dtype=jnp.float32)

    loss = jax.block_until_ready(custom_loss(inp, out, den))
    ref = jax.block_until_ready(custom_loss_ref(inp, out, den))
    assert jnp.allclose(loss, ref, rtol=1e-5, atol=1e-5), (loss, ref)

    # Exercise the tiled + ragged-last-tile path as well.
    loss_t = jax.block_until_ready(custom_loss(inp, out, den, batch_tile=8))
    assert jnp.allclose(loss_t, ref, rtol=1e-5, atol=1e-5), (loss_t, ref)

    print("KERNEL_OK")
</pallas_src>

<mosaic_0001>
module attributes {stable_mosaic.version = 11 : i64} {
  func.func @_custom_loss_kernel(%arg0: i32, %arg1: memref<8x32xf32, #tpu.memory_space<vmem>>, %arg2: memref<8x32xf32, #tpu.memory_space<vmem>>, %arg3: memref<8x31xf32, #tpu.memory_space<vmem>>, %arg4: memref<1x1x1xf32, #tpu.memory_space<vmem>>) attributes {dimension_semantics = [#tpu.dimension_semantics<parallel>], iteration_bounds = array<i64: 1>, scalar_prefetch = 0 : i64, scratch_operands = 0 : i64, tpu.core_type = #tpu.core_type<tc>, window_params = [{transform_indices = @transform_0, window_bounds = array<i64: 8, 32>}, {transform_indices = @transform_1, window_bounds = array<i64: 8, 32>}, {transform_indices = @transform_2, window_bounds = array<i64: 8, 31>}, {transform_indices = @transform_3, window_bounds = array<i64: 1, 1, 1>}]} {
    %c0 = arith.constant 0 : index
    %c0_0 = arith.constant 0 : index
    %0 = vector.load %arg1[%c0, %c0_0] : memref<8x32xf32, #tpu.memory_space<vmem>>, vector<8x32xf32>
    %c0_1 = arith.constant 0 : index
    %c0_2 = arith.constant 0 : index
    %1 = vector.load %arg2[%c0_1, %c0_2] : memref<8x32xf32, #tpu.memory_space<vmem>>, vector<8x32xf32>
    %c0_3 = arith.constant 0 : index
    %c0_4 = arith.constant 0 : index
    %2 = vector.load %arg3[%c0_3, %c0_4] : memref<8x31xf32, #tpu.memory_space<vmem>>, vector<8x31xf32>
    %3 = arith.subf %1, %0 : vector<8x32xf32>
    %4 = vector.extract_strided_slice %0 {offsets = [0, 1], sizes = [8, 31], strides = [1, 1]} : vector<8x32xf32> to vector<8x31xf32>
    %5 = arith.subf %2, %4 : vector<8x31xf32>
    %cst = arith.constant dense<0.000000e+00> : vector<8xf32>
    %6 = vector.multi_reduction <add>, %2, %cst [1] : vector<8x31xf32> to vector<8xf32>
    %7 = vector.shape_cast %6 : vector<8xf32> to vector<8x1xf32>
    %8 = vector.extract_strided_slice %0 {offsets = [0, 0], sizes = [8, 1], strides = [1, 1]} : vector<8x32xf32> to vector<8x1xf32>
    %9 = arith.subf %7, %8 : vector<8x1xf32>
    %10 = arith.mulf %3, %3 : vector<8x32xf32>
    %11 = vector.shape_cast %10 : vector<8x32xf32> to vector<1x8x32xf32>
    %cst_5 = arith.constant dense<0.000000e+00> : vector<1xf32>
    %12 = vector.multi_reduction <add>, %11, %cst_5 [1, 2] : vector<1x8x32xf32> to vector<1xf32>
    %13 = vector.shape_cast %12 : vector<1xf32> to vector<1x1x1xf32>
    %14 = vector.extract %13[0, 0, 0] : f32 from vector<1x1x1xf32>
    %cst_6 = arith.constant 3.906250e-03 : f32
    %15 = arith.mulf %cst_6, %14 : f32
    %16 = arith.mulf %5, %5 : vector<8x31xf32>
    %17 = vector.shape_cast %16 : vector<8x31xf32> to vector<1x8x31xf32>
    %cst_7 = arith.constant dense<0.000000e+00> : vector<1xf32>
    %18 = vector.multi_reduction <add>, %17, %cst_7 [1, 2] : vector<1x8x31xf32> to vector<1xf32>
    %19 = vector.shape_cast %18 : vector<1xf32> to vector<1x1x1xf32>
    %20 = vector.extract %19[0, 0, 0] : f32 from vector<1x1x1xf32>
    %cst_8 = arith.constant 0.00201612897 : f32
    %21 = arith.mulf %cst_8, %20 : f32
    %22 = arith.addf %15, %21 : f32
    %23 = math.absf %9 : vector<8x1xf32>
    %24 = vector.shape_cast %23 : vector<8x1xf32> to vector<1x8x1xf32>
    %cst_9 = arith.constant dense<0.000000e+00> : vector<1xf32>
    %25 = vector.multi_reduction <add>, %24, %cst_9 [1, 2] : vector<1x8x1xf32> to vector<1xf32>
    %26 = vector.shape_cast %25 : vector<1xf32> to vector<1x1x1xf32>
    %27 = vector.extract %26[0, 0, 0] : f32 from vector<1x1x1xf32>
    %cst_10 = arith.constant 1.250000e-01 : f32
    %28 = arith.mulf %cst_10, %27 : f32
    %29 = arith.addf %22, %28 : f32
    %30 = vector.broadcast %29 : f32 to vector<1x1x1xf32>
    %c0_11 = arith.constant 0 : index
    %c0_12 = arith.constant 0 : index
    %c0_13 = arith.constant 0 : index
    %31 = vector.load %arg4[%c0_11, %c0_12, %c0_13] : memref<1x1x1xf32, #tpu.memory_space<vmem>>, vector<1x1x1xf32>
    tpu.vector_store %arg4[%c0_11, %c0_12, %c0_13], %30 {strides = array<i32>} : memref<1x1x1xf32, #tpu.memory_space<vmem>>, vector<1x1x1xf32>,
    return
  }
  func.func @transform_0(%arg0: i32) -> (i32, i32) {
    %c0_i32 = arith.constant 0 : i32
    %c0_i32_0 = arith.constant 0 : i32
    return %arg0, %c0_i32 : i32, i32
  }
  func.func @transform_1(%arg0: i32) -> (i32, i32) {
    %c0_i32 = arith.constant 0 : i32
    %c0_i32_0 = arith.constant 0 : i32
    return %arg0, %c0_i32 : i32, i32
  }
  func.func @transform_2(%arg0: i32) -> (i32, i32) {
    %c0_i32 = arith.constant 0 : i32
    %c0_i32_0 = arith.constant 0 : i32
    return %arg0, %c0_i32 : i32, i32
  }
  func.func @transform_3(%arg0: i32) -> (i32, i32, i32) {
    %c0_i32 = arith.constant 0 : i32
    %c0_i32_0 = arith.constant 0 : i32
    %c0_i32_1 = arith.constant 0 : i32
    return %arg0, %c0_i32, %c0_i32_0 : i32, i32, i32
  }
}

</mosaic_0001>

<llo_original>
// kernel: tpu_custom_call.1
$region0: #{tpu_custom_call.1}
  #allocation0 [shape = 'u32[]', space=smem, size = 0x4, offset = 0x4, fixed_abs, tag = 'smem constant byte address 0x4 - core index']
  #allocation1 [shape = 'u32[144,128]{1,0:T(1,128)}', space=vmem, size = 0x12000, scoped, tag = 'internal scratch']
  %s0 = inlined_call_operand.hbm [shape: f32[8,32], index: 0, kind: input, shape index: {}]
  %s1 = inlined_call_operand.hbm [shape: f32[8,32], index: 1, kind: input, shape index: {}]
  %s2 = inlined_call_operand.hbm [shape: f32[8,31], index: 2, kind: input, shape index: {}]
  %s3 = inlined_call_operand.hbm [shape: f32[1,1,1], index: 3, kind: output, shape index: {}]
  %s4 = sld [smem:[#allocation0]]
  $region34: #{tpu_custom_call.1} parent=0
    _
  %s6 = ssub.s32 1, %s4
  %s7 = scalar_select 0, %s6, %s4
  $region1: #{tpu_custom_call.1} parent=0
    #allocation2 [shape = 'u8[4096]{0}', space=vmem, size = 0x1000, scoped, tag = 'input window, operand 0, single buffered']
    #allocation3 [shape = 's32[1]{0}', space=sflag, size = 0x4, scoped, tag = 'scoped memory for tpu_custom_call.1']
    #allocation4 [shape = 's32[1]{0}', space=sflag, size = 0x4, scoped, tag = 'scoped memory for tpu_custom_call.1']
    #allocation5 [shape = 'u8[4096]{0}', space=vmem, size = 0x1000, scoped, tag = 'input window, operand 1, single buffered']
    #allocation6 [shape = 's32[1]{0}', space=sflag, size = 0x4, scoped, tag = 'scoped memory for tpu_custom_call.1']
    #allocation7 [shape = 'u8[4096]{0}', space=vmem, size = 0x1000, scoped, tag = 'input window, operand 2, single buffered']
    #allocation8 [shape = 'u8[512]{0}', space=vmem, size = 0x400, scoped, tag = 'output window, operand 0, single buffered']
    %8 = vsyncpa [#allocation3], 0
    %9 = vsyncpa [#allocation6], 0
    %10 = vsyncpa [#allocation4], 0
    // Predicated region
    $region2: #{tpu_custom_call.1} parent=1 // pred_check
      _
    $region3: #{tpu_custom_call.1} parent=1 // pred_check_branch
      %12 = sbr.rel (0) target = $region5
    $region4: #{tpu_custom_call.1} parent=1 // pred_region
      %s14 = ssub.s32 128, 128
      %15 = vsyncadd [#allocation3], %s14
      %s17 = sshll.u32 [#allocation2], 4
      %s18 = int_to_ptr.vmem [resolvable:$true] %s17
      %20 = dma.hbm_to_vmem [thread:$0]  %s0, 128, %s18, [#allocation3]
    $region5: #{tpu_custom_call.1} parent=1 // pred_fallthru
      _
    // Predicated region
    $region6: #{tpu_custom_call.1} parent=1 // pred_check
      _
    $region7: #{tpu_custom_call.1} parent=1 // pred_check_branch
      %22 = sbr.rel (0) target = $region9
    $region8: #{tpu_custom_call.1} parent=1 // pred_region
      %s24 = ssub.s32 128, 128
      %25 = vsyncadd [#allocation6], %s24
      %s27 = sshll.u32 [#allocation5], 4
      %s28 = int_to_ptr.vmem [resolvable:$true] %s27
      %30 = dma.hbm_to_vmem [thread:$0]  %s1, 128, %s28, [#allocation6]
    $region9: #{tpu_custom_call.1} parent=1 // pred_fallthru
      _
    // Predicated region
    $region10: #{tpu_custom_call.1} parent=1 // pred_check
      _
    $region11: #{tpu_custom_call.1} parent=1 // pred_check_branch
      %32 = sbr.rel (0) target = $region13
    $region12: #{tpu_custom_call.1} parent=1 // pred_region
      %s34 = ssub.s32 128, 128
      %35 = vsyncadd [#allocation6], %s34
      %s37 = sshll.u32 [#allocation7], 4
      %s38 = int_to_ptr.vmem [resolvable:$true] %s37
      %40 = dma.hbm_to_vmem [thread:$0]  %s2, 128, %s38, [#allocation6]
    $region13: #{tpu_custom_call.1} parent=1 // pred_fallthru
      _
    // Predicated region
    $region14: #{tpu_custom_call.1} parent=1 // pred_check
      _
    $region15: #{tpu_custom_call.1} parent=1 // pred_check_branch
      %42 = sbr.rel (0) target = $region17
    $region16: #{tpu_custom_call.1} parent=1 // pred_region
      %43 = dma.done [#allocation3], 128
    $region17: #{tpu_custom_call.1} parent=1 // pred_fallthru
      _
    // Predicated region
    $region18: #{tpu_custom_call.1} parent=1 // pred_check
      _
    $region19: #{tpu_custom_call.1} parent=1 // pred_check_branch
      %45 = sbr.rel (0) target = $region21
    $region20: #{tpu_custom_call.1} parent=1 // pred_region
      %46 = dma.done [#allocation6], 128
    $region21: #{tpu_custom_call.1} parent=1 // pred_fallthru
      _
    // Predicated region
    $region22: #{tpu_custom_call.1} parent=1 // pred_check
      _
    $region23: #{tpu_custom_call.1} parent=1 // pred_check_branch
      %48 = sbr.rel (0) target = $region25
    $region24: #{tpu_custom_call.1} parent=1 // pred_region
      %49 = dma.done [#allocation6], 128
    $region25: #{tpu_custom_call.1} parent=1 // pred_fallthru
      _
    %v50 = vld [vmem:[#allocation2] sm:$0xff]
    %v51 = vld [vmem:[#allocation5] sm:$0xff]
    %v52 = vld [vmem:[#allocation7] sm:$0xff]
    %v53 = vsub.f32 %v51, %v50
    %55 = vrot.lane.b32.xlu0 %v50, 127
    %v56 = vpop.permute.xlu0 %55
    %v58 = vsub.f32 %v52, %v56
    %vm59 = vcmask 252928
    %v60 = vsel %vm59, %v52, 0.0
    %61 = vadd.xlane.f32.xlu0 %v60
    %v62 = vpop.xlane.xlu0 %61
    %v63 = vsub.f32 %v62, %v50
    %v64 = vmul.f32 %v53, %v53
    %vm65 = vcmask 261120
    %v66 = vsel %vm65, %v64, 0.0
    %67 = vadd.xlane.f32.xlu0 %v66
    %v68 = vpop.xlane.xlu0 %67
    %v69 = vrot.slane %v68, 4
    %v70 = vadd.f32 %v68, %v69
    %v71 = vrot.slane %v70, 2
    %v72 = vadd.f32 %v70, %v71
    %v73 = vrot.slane %v72, 1
    %v74 = vadd.f32 %v72, %v73
    %s75 = vtos %v74
    %s76 = smul.f32 %s75, 0.00390625
    %v77 = vmul.f32 %v58, %v58
    %v78 = vsel %vm59, %v77, 0.0
    %79 = vadd.xlane.f32.xlu0 %v78
    %v80 = vpop.xlane.xlu0 %79
    %v81 = vrot.slane %v80, 4
    %v82 = vadd.f32 %v80, %v81
    %v83 = vrot.slane %v82, 2
    %v84 = vadd.f32 %v82, %v83
    %v85 = vrot.slane %v84, 1
    %v86 = vadd.f32 %v84, %v85
    %s87 = vtos %v86
    %s88 = smul.f32 %s87, 0.002016129
    %s89 = sadd.f32 %s76, %s88
    %v90 = vand.u32 2147483647, %v63
    %vm91 = vcmask 7168
    %v92 = vsel %vm91, %v90, 0.0
    %93 = vadd.xlane.f32.xlu0 %v92
    %v94 = vpop.xlane.xlu0 %93
    %v95 = vrot.slane %v94, 4
    %v96 = vadd.f32 %v94, %v95
    %v97 = vrot.slane %v96, 2
    %v98 = vadd.f32 %v96, %v97
    %v99 = vrot.slane %v98, 1
    %v100 = vadd.f32 %v98, %v99
    %s101 = vtos %v100
    %s102 = smul.f32 %s101, 0.125
    %s103 = sadd.f32 %s89, %s102
    %v104 = vstv %s103
    %vm105 = vcmask 0
    %106 = vst.msk [vmem:[#allocation8] sm:$0x1] %vm105, %v104
    // Predicated region
    $region26: #{tpu_custom_call.1} parent=1 // pred_check
      _
    $region27: #{tpu_custom_call.1} parent=1 // pred_check_branch
      %108 = sbr.rel (0) target = $region29
    $region28: #{tpu_custom_call.1} parent=1 // pred_region
      %s110 = ssub.s32 16, 16
      %111 = vsyncadd [#allocation4], %s110
      %s113 = sshll.u32 [#allocation8], 4
      %s114 = int_to_ptr.vmem [resolvable:$true] %s113
      %116 = dma.vmem_to_hbm [thread:$0]  %s114, 16, %s3, [#allocation4]
    $region29: #{tpu_custom_call.1} parent=1 // pred_fallthru
      _
    // Predicated region
    $region30: #{tpu_custom_call.1} parent=1 // pred_check
      _
    $region31: #{tpu_custom_call.1} parent=1 // pred_check_branch
      %118 = sbr.rel (0) target = $region33
    $region32: #{tpu_custom_call.1} parent=1 // pred_region
      %119 = dma.done [#allocation4], 16
    $region33: #{tpu_custom_call.1} parent=1 // pred_fallthru
      _
    %120 = vsyncpa [#allocation3], 1
    %121 = vsyncpa [#allocation6], 1
    %122 = vsyncpa [#allocation4], 1

</llo_original>
